<compile_context>
chip_gen: v7x
topology: tpu7x:2x2x1
jax: 0.10.0
libtpu: 0.0.40
codegen_flags: <defaults>
</compile_context>

<pallas_src>
import functools
import math

import jax
import jax.numpy as jnp
from jax import lax
from jax.experimental import pallas as pl
from jax.experimental.pallas import tpu as pltpu

_LANE = 128
_SUBLANE = 8  # f32 sublane tile


def _round_up(v, m):
    return ((v + m - 1) // m) * m


def _cdiv(a, b):
    return (a + b - 1) // b


def _padded_x_tile_bytes(tb, n, d, itemsize):
    """VMEM bytes of a (tb, n, d) tile after TPU layout padding."""
    sub = _SUBLANE if itemsize >= 4 else _SUBLANE * (4 // itemsize)
    return tb * _round_up(n, sub) * _round_up(d, _LANE) * itemsize


def _padded_out_tile_bytes(tb, d, itemsize):
    return _round_up(tb, _SUBLANE) * _round_up(d, _LANE) * itemsize


def _vmem_budget_bytes():
    """Generation-aware VMEM budget for this kernel's buffers."""
    phys = 64 << 20  # conservative fallback = v7x physical VMEM
    try:
        phys = int(pltpu.get_tpu_info().vmem_capacity_bytes)
    except Exception:
        pass
    # ~75% of physical: ~48 MiB on v7x (64 MiB), ~96 MiB on v5e/v6e (128 MiB).
    return max((phys * 3) // 4, 32 << 20)


def _pick_block_b(B, N, D, itemsize, budget, *, target_step_bytes=2 << 20):
    """Batch rows per grid step: ~1-2 MiB of padded x per step, capped by the
    (padded, double-buffered x + out + kq) VMEM budget."""
    row = _padded_x_tile_bytes(1, N, D, itemsize)            # padded bytes / batch row
    out_row = _padded_out_tile_bytes(8, D, itemsize) // 8
    per_row = 2 * (row + out_row)                            # double-buffered x + out
    fixed = 2 * _padded_x_tile_bytes(1, 1, D, itemsize)      # kq (double-buffered)
    tb_vmem = (budget - fixed) // per_row
    if tb_vmem < 8:
        return 0                                             # TB=8 doesn't fit -> N-tiled path
    tb_target = max(8, _cdiv(target_step_bytes, row))
    tb = min(tb_vmem, tb_target)
    tb = max(8, (tb // 8) * 8)
    b8 = _round_up(B, 8)
    tb = min(tb, b8)
    # Megacore / v7x: prefer a grid of >= 2 steps, but only when the per-step
    # DMA volume stays >= ~1 MiB (per-step size wins if they conflict).
    if tb == b8 and b8 >= 16:
        half = max(8, ((b8 // 2) // 8) * 8)
        if half * row >= (1 << 20):
            tb = half
    return tb


def _pick_block_n(N, D, itemsize, budget, *, tb=8, target_step_bytes=2 << 20):
    """Document rows per step for the N-tiled (online softmax) path."""
    per_n = tb * _round_up(D, _LANE) * itemsize
    usable = max(1 << 20, budget - (4 << 20))                # room for out/scratch/kq
    tn_vmem = max(8, ((usable // (2 * per_n)) // 8) * 8)     # double-buffered x
    tn_target = max(8, (_cdiv(target_step_bytes, per_n) // 8) * 8)
    tn = min(tn_vmem, tn_target, _round_up(N, 8))
    return max(8, tn)


# --------------------------------------------------------------------------
# Single-pass kernel: full N per block, batch tiled; compute chunked by 8 rows.
# --------------------------------------------------------------------------
def _attention_kernel(x_ref, kq_ref, o_ref):
    # x_ref : (TB, N, D) tile ; kq_ref : (1, D) folded pre-scaled projection
    # o_ref : (TB, D)
    kq = kq_ref[...].astype(jnp.float32)[:, None, :]          # (1, 1, D)
    tb = x_ref.shape[0]
    ch = min(tb, 8)
    n_chunks = tb // ch

    def process(r0):
        x = x_ref[pl.ds(r0, ch), :, :].astype(jnp.float32)    # (ch, N, D)
        # Keep everything in the x layout: D (lane) reduce with keepdims, then
        # N (sublane) reductions -- no lane<->sublane relayouts.
        s = jnp.sum(x * kq, axis=-1, keepdims=True)           # (ch, N, 1)
        m = jnp.max(s, axis=1, keepdims=True)                 # (ch, 1, 1)
        p = jnp.exp(s - m)                                     # (ch, N, 1)
        denom = jnp.sum(p, axis=1, keepdims=True)              # (ch, 1, 1)
        attn = p / denom                                        # exact divide
        agg = jnp.sum(attn * x, axis=1)                         # (ch, D)
        o_ref[pl.ds(r0, ch), :] = agg.astype(o_ref.dtype)

    if n_chunks <= 4:
        for c in range(n_chunks):                               # static unroll
            process(c * ch)
    else:
        def body(c, carry):
            process(pl.multiple_of(c * ch, ch))
            return carry
        lax.fori_loop(0, n_chunks, body, 0)


# --------------------------------------------------------------------------
# N-tiled kernel: flash-style online softmax over the document axis.
# --------------------------------------------------------------------------
def _attention_ntiled_kernel(n_valid, x_ref, kq_ref, o_ref, m_sc, l_sc, acc_sc):
    nb = pl.program_id(1)

    @pl.when(nb == 0)
    def _():
        m_sc[...] = jnp.full_like(m_sc, -jnp.inf)
        l_sc[...] = jnp.zeros_like(l_sc)
        acc_sc[...] = jnp.zeros_like(acc_sc)

    x = x_ref[...].astype(jnp.float32)                          # (TB, TN, D)
    kq = kq_ref[...].astype(jnp.float32)[:, None, :]            # (1, 1, D)
    tn = x.shape[1]

    s = jnp.sum(x * kq, axis=-1, keepdims=True)                 # (TB, TN, 1)
    if n_valid % tn:  # static: mask zero-padded documents in the last N tile
        n_idx = nb * tn + lax.broadcasted_iota(jnp.int32, s.shape, 1)
        s = jnp.where(n_idx < n_valid, s, jnp.float32(-1e30))

    m_prev = m_sc[...]                                          # (TB, 1, 1)
    m_new = jnp.maximum(m_prev, jnp.max(s, axis=1, keepdims=True))
    alpha = jnp.exp(m_prev - m_new)                             # (TB, 1, 1)
    p = jnp.exp(s - m_new)                                      # (TB, TN, 1)
    l_sc[...] = alpha * l_sc[...] + jnp.sum(p, axis=1, keepdims=True)
    acc_sc[...] = alpha[:, 0, :] * acc_sc[...] + jnp.sum(p * x, axis=1)
    m_sc[...] = m_new

    @pl.when(nb == pl.num_programs(1) - 1)
    def _():
        l = l_sc[...]                                           # (TB, 1, 1)
        o_ref[...] = (acc_sc[...] / l[:, 0, :]).astype(o_ref.dtype)


def _attention_ntiled(x, kq, *, tb, tn, budget, itemsize):
    B, N, D = x.shape
    B_pad = _round_up(B, tb)
    N_pad = _round_up(N, tn)
    if B_pad != B or N_pad != N:
        x = jnp.pad(x, ((0, B_pad - B), (0, N_pad - N), (0, 0)))
    cost = pl.CostEstimate(
        flops=4 * B_pad * N_pad * D,
        transcendentals=2 * B_pad * N_pad,
        bytes_accessed=B_pad * N_pad * D * itemsize + B_pad * D * itemsize)
    out = pl.pallas_call(
        functools.partial(_attention_ntiled_kernel, N),
        out_shape=jax.ShapeDtypeStruct((B_pad, D), x.dtype),
        grid_spec=pltpu.PrefetchScalarGridSpec(
            num_scalar_prefetch=0,
            grid=(B_pad // tb, N_pad // tn),
            in_specs=[
                pl.BlockSpec((tb, tn, D), lambda b, n: (b, n, 0)),
                pl.BlockSpec((1, D), lambda b, n: (0, 0)),
            ],
            out_specs=pl.BlockSpec((tb, D), lambda b, n: (b, 0)),
            scratch_shapes=[
                pltpu.VMEM((tb, 1, 1), jnp.float32),   # running max
                pltpu.VMEM((tb, 1, 1), jnp.float32),   # running denominator
                pltpu.VMEM((tb, D), jnp.float32),      # running weighted sum
            ],
        ),
        compiler_params=pltpu.CompilerParams(
            dimension_semantics=("parallel", "arbitrary"),
            vmem_limit_bytes=int(budget)),
        cost_estimate=cost,
    )(x, kq)
    return out[:B]


def attention_forward(x, w_key_t, query, *, block_b=None, block_n=None):
    """x: (B, N, D); w_key_t: (D, H) = nn.Linear weight pre-transposed;
    query: (H, 1). Returns (B, D)."""
    B, N, D = x.shape
    Dw, H = w_key_t.shape
    assert Dw == D and query.shape == (H, 1)
    itemsize = jnp.dtype(x.dtype).itemsize

    # Fold W_key and query: `key` is only consumed as key @ query, so
    # kq = (W_key^T @ query) / sqrt(D) is computed once (tiny matvec) and the
    # kernel is a pure memory-bound stream over x.
    kq = jnp.dot(w_key_t, query, preferred_element_type=jnp.float32)    # (D, 1)
    kq = (kq / jnp.float32(math.sqrt(D))).reshape(1, D).astype(x.dtype)

    budget = _vmem_budget_bytes()

    # Large-document fallback: a TB=8 slab of x must stay <= ~1/4 of the budget.
    slab8 = _padded_x_tile_bytes(8, N, D, itemsize)
    use_ntiled = (block_n is not None) or (slab8 * 4 > budget)

    tb = 0
    if not use_ntiled:
        tb = block_b if block_b is not None else _pick_block_b(B, N, D, itemsize, budget)
        if tb <= 0:
            use_ntiled = True
        else:
            tb = max(8, (tb // 8) * 8)

    if use_ntiled:
        tb = max(8, ((block_b or 8) // 8) * 8)
        tn = block_n if block_n is not None else _pick_block_n(N, D, itemsize, budget, tb=tb)
        return _attention_ntiled(x, kq, tb=tb, tn=tn, budget=budget, itemsize=itemsize)

    B_pad = _round_up(B, tb)
    x_p = x if B_pad == B else jnp.pad(x, ((0, B_pad - B), (0, 0), (0, 0)))
    cost = pl.CostEstimate(
        flops=4 * B_pad * N * D,
        transcendentals=B_pad * N,
        bytes_accessed=B_pad * N * D * itemsize + B_pad * D * itemsize)
    out = pl.pallas_call(
        _attention_kernel,
        out_shape=jax.ShapeDtypeStruct((B_pad, D), x.dtype),
        grid_spec=pltpu.PrefetchScalarGridSpec(
            num_scalar_prefetch=0,
            grid=(B_pad // tb,),
            in_specs=[
                pl.BlockSpec((tb, N, D), lambda b: (b, 0, 0)),   # big streamed x tile
                pl.BlockSpec((1, D), lambda b: (0, 0)),          # folded kq
            ],
            out_specs=pl.BlockSpec((tb, D), lambda b: (b, 0)),
        ),
        compiler_params=pltpu.CompilerParams(
            dimension_semantics=("parallel",),
            vmem_limit_bytes=int(budget)),
        cost_estimate=cost,
    )(x_p, kq)
    return out[:B]


def reference_forward(x, w_key_t, query):
    """Pure-JAX reference mirroring the PyTorch module (two-step matmul)."""
    B, N, D = x.shape
    key = jnp.einsum("bnd,dh->bnh", x, w_key_t)                     # (B, N, H)
    scores = jnp.einsum("bnh,ho->bno", key, query) / math.sqrt(D)   # (B, N, 1)
    attn = jax.nn.softmax(scores, axis=1)                           # softmax over N
    return jnp.sum(attn * x, axis=1)                                # (B, D)


if __name__ == "__main__":
    # Small shapes consistent with the module's forward.
    B, N, D, H = 16, 8, 32, 16

    root = jax.random.PRNGKey(0)
    kx, kw, kqk = jax.random.split(root, 3)

    x = jax.random.normal(kx, (B, N, D), dtype=jnp.float32)
    bound = 1.0 / math.sqrt(D)  # nn.Linear(D, H, bias=False) default init range
    w_key_t = jax.random.uniform(kw, (D, H), jnp.float32, minval=-bound, maxval=bound)
    query = jax.random.normal(kqk, (H, 1), dtype=jnp.float32)       # nn.Parameter(randn(H,1))

    ref = reference_forward(x, w_key_t, query)

    # Default (single-pass, batch-tiled) path.
    out = jax.block_until_ready(attention_forward(x, w_key_t, query))
    assert out.shape == (B, D), out.shape
    assert jnp.allclose(out, ref, atol=1e-3, rtol=1e-3), (
        float(jnp.max(jnp.abs(out - ref))))

    # Exercise the N-tiled online-softmax fallback (ragged N hits the mask path).
    B2, N2 = 16, 20
    x2 = jax.random.normal(jax.random.PRNGKey(1), (B2, N2, D), dtype=jnp.float32)
    ref2 = reference_forward(x2, w_key_t, query)
    out2 = jax.block_until_ready(
        attention_forward(x2, w_key_t, query, block_b=8, block_n=8))
    assert out2.shape == (B2, D), out2.shape
    assert jnp.allclose(out2, ref2, atol=1e-3, rtol=1e-3), (
        float(jnp.max(jnp.abs(out2 - ref2))))

    print("KERNEL_OK")
</pallas_src>

<mosaic_0001>
module attributes {stable_mosaic.version = 11 : i64} {
  func.func @_attention_kernel(%arg0: i32, %arg1: memref<16x8x32xf32, #tpu.memory_space<vmem>>, %arg2: memref<1x32xf32, #tpu.memory_space<vmem>>, %arg3: memref<16x32xf32, #tpu.memory_space<vmem>>) attributes {dimension_semantics = [#tpu.dimension_semantics<parallel>], iteration_bounds = array<i64: 1>, scalar_prefetch = 0 : i64, scratch_operands = 0 : i64, tpu.core_type = #tpu.core_type<tc>, window_params = [{transform_indices = @transform_0, window_bounds = array<i64: 16, 8, 32>}, {pipeline_mode = #tpu.pipeline_mode<synchronous>, transform_indices = @transform_1, window_bounds = array<i64: 1, 32>}, {transform_indices = @transform_2, window_bounds = array<i64: 16, 32>}]} {
    %c0 = arith.constant 0 : index
    %c0_0 = arith.constant 0 : index
    %0 = vector.load %arg2[%c0, %c0_0] : memref<1x32xf32, #tpu.memory_space<vmem>>, vector<1x32xf32>
    %1 = vector.shape_cast %0 : vector<1x32xf32> to vector<1x1x32xf32>
    %c0_1 = arith.constant 0 : index
    %c0_2 = arith.constant 0 : index
    %c0_3 = arith.constant 0 : index
    %2 = vector.load %arg1[%c0_1, %c0_2, %c0_3] : memref<16x8x32xf32, #tpu.memory_space<vmem>>, vector<8x8x32xf32>
    %3 = vector.broadcast %1 : vector<1x1x32xf32> to vector<8x8x32xf32>
    %4 = arith.mulf %2, %3 : vector<8x8x32xf32>
    %cst = arith.constant dense<0.000000e+00> : vector<8x8xf32>
    %5 = vector.multi_reduction <add>, %4, %cst [2] : vector<8x8x32xf32> to vector<8x8xf32>
    %6 = vector.shape_cast %5 : vector<8x8xf32> to vector<8x8x1xf32>
    %cst_4 = arith.constant dense<0xFF800000> : vector<8x1xf32>
    %7 = vector.multi_reduction <maximumf>, %6, %cst_4 [1] : vector<8x8x1xf32> to vector<8x1xf32>
    %8 = vector.shape_cast %7 : vector<8x1xf32> to vector<8x1x1xf32>
    %9 = vector.broadcast %8 : vector<8x1x1xf32> to vector<8x8x1xf32>
    %10 = arith.subf %6, %9 : vector<8x8x1xf32>
    %11 = math.exp %10 : vector<8x8x1xf32>
    %cst_5 = arith.constant dense<0.000000e+00> : vector<8x1xf32>
    %12 = vector.multi_reduction <add>, %11, %cst_5 [1] : vector<8x8x1xf32> to vector<8x1xf32>
    %13 = vector.shape_cast %12 : vector<8x1xf32> to vector<8x1x1xf32>
    %14 = vector.broadcast %13 : vector<8x1x1xf32> to vector<8x8x1xf32>
    %15 = arith.divf %11, %14 : vector<8x8x1xf32>
    %16 = vector.broadcast %15 : vector<8x8x1xf32> to vector<8x8x32xf32>
    %17 = arith.mulf %16, %2 : vector<8x8x32xf32>
    %cst_6 = arith.constant dense<0.000000e+00> : vector<8x32xf32>
    %18 = vector.multi_reduction <add>, %17, %cst_6 [1] : vector<8x8x32xf32> to vector<8x32xf32>
    %c0_7 = arith.constant 0 : index
    %c0_8 = arith.constant 0 : index
    %19 = vector.load %arg3[%c0_7, %c0_8] : memref<16x32xf32, #tpu.memory_space<vmem>>, vector<8x32xf32>
    tpu.vector_store %arg3[%c0_7, %c0_8], %18 {strides = array<i32>} : memref<16x32xf32, #tpu.memory_space<vmem>>, vector<8x32xf32>,
    %c8 = arith.constant 8 : index
    %c0_9 = arith.constant 0 : index
    %c0_10 = arith.constant 0 : index
    %20 = vector.load %arg1[%c8, %c0_9, %c0_10] : memref<16x8x32xf32, #tpu.memory_space<vmem>>, vector<8x8x32xf32>
    %21 = vector.broadcast %1 : vector<1x1x32xf32> to vector<8x8x32xf32>
    %22 = arith.mulf %20, %21 : vector<8x8x32xf32>
    %cst_11 = arith.constant dense<0.000000e+00> : vector<8x8xf32>
    %23 = vector.multi_reduction <add>, %22, %cst_11 [2] : vector<8x8x32xf32> to vector<8x8xf32>
    %24 = vector.shape_cast %23 : vector<8x8xf32> to vector<8x8x1xf32>
    %cst_12 = arith.constant dense<0xFF800000> : vector<8x1xf32>
    %25 = vector.multi_reduction <maximumf>, %24, %cst_12 [1] : vector<8x8x1xf32> to vector<8x1xf32>
    %26 = vector.shape_cast %25 : vector<8x1xf32> to vector<8x1x1xf32>
    %27 = vector.broadcast %26 : vector<8x1x1xf32> to vector<8x8x1xf32>
    %28 = arith.subf %24, %27 : vector<8x8x1xf32>
    %29 = math.exp %28 : vector<8x8x1xf32>
    %cst_13 = arith.constant dense<0.000000e+00> : vector<8x1xf32>
    %30 = vector.multi_reduction <add>, %29, %cst_13 [1] : vector<8x8x1xf32> to vector<8x1xf32>
    %31 = vector.shape_cast %30 : vector<8x1xf32> to vector<8x1x1xf32>
    %32 = vector.broadcast %31 : vector<8x1x1xf32> to vector<8x8x1xf32>
    %33 = arith.divf %29, %32 : vector<8x8x1xf32>
    %34 = vector.broadcast %33 : vector<8x8x1xf32> to vector<8x8x32xf32>
    %35 = arith.mulf %34, %20 : vector<8x8x32xf32>
    %cst_14 = arith.constant dense<0.000000e+00> : vector<8x32xf32>
    %36 = vector.multi_reduction <add>, %35, %cst_14 [1] : vector<8x8x32xf32> to vector<8x32xf32>
    %c8_15 = arith.constant 8 : index
    %c0_16 = arith.constant 0 : index
    %37 = vector.load %arg3[%c8_15, %c0_16] : memref<16x32xf32, #tpu.memory_space<vmem>>, vector<8x32xf32>
    tpu.vector_store %arg3[%c8_15, %c0_16], %36 {strides = array<i32>} : memref<16x32xf32, #tpu.memory_space<vmem>>, vector<8x32xf32>,
    return
  }
  func.func @transform_0(%arg0: i32) -> (i32, i32, i32) {
    %c0_i32 = arith.constant 0 : i32
    %c0_i32_0 = arith.constant 0 : i32
    %c0_i32_1 = arith.constant 0 : i32
    return %arg0, %c0_i32, %c0_i32_0 : i32, i32, i32
  }
  func.func @transform_1(%arg0: i32) -> (i32, i32) {
    %c0_i32 = arith.constant 0 : i32
    %c0_i32_0 = arith.constant 0 : i32
    %c0_i32_1 = arith.constant 0 : i32
    return %c0_i32, %c0_i32_0 : i32, i32
  }
  func.func @transform_2(%arg0: i32) -> (i32, i32) {
    %c0_i32 = arith.constant 0 : i32
    %c0_i32_0 = arith.constant 0 : i32
    return %arg0, %c0_i32 : i32, i32
  }
}

</mosaic_0001>

<llo_original>
// kernel: tpu_custom_call.1
$region0: #{tpu_custom_call.1}
  #allocation0 [shape = 'u32[]', space=smem, size = 0x4, offset = 0x4, fixed_abs, tag = 'smem constant byte address 0x4 - core index']
  #allocation1 [shape = 'u32[144,128]{1,0:T(1,128)}', space=vmem, size = 0x12000, scoped, tag = 'internal scratch']
  %s0 = inlined_call_operand.hbm [shape: f32[16,8,32], index: 0, kind: input, shape index: {}]
  %s1 = inlined_call_operand.vmem [shape: f32[1,32], index: 1, kind: input, shape index: {}]
  %s2 = inlined_call_operand.hbm [shape: f32[16,32], index: 2, kind: output, shape index: {}]
  %s3 = sld [smem:[#allocation0]]
  $region22: #{tpu_custom_call.1} parent=0
    _
  %s5 = ssub.s32 1, %s3
  %s6 = scalar_select 0, %s5, %s3
  $region1: #{tpu_custom_call.1} parent=0
    #allocation2 [shape = 'u8[65536]{0}', space=vmem, size = 0x10000, scoped, tag = 'input window, operand 0, single buffered']
    #allocation3 [shape = 's32[1]{0}', space=sflag, size = 0x4, scoped, tag = 'scoped memory for tpu_custom_call.1']
    #allocation4 [shape = 's32[1]{0}', space=sflag, size = 0x4, scoped, tag = 'scoped memory for tpu_custom_call.1']
    #allocation5 [shape = 'u8[8192]{0}', space=vmem, size = 0x2000, scoped, tag = 'output window, operand 0, single buffered']
    %7 = vsyncpa [#allocation3], 0
    %8 = vsyncpa [#allocation4], 0
    // Predicated region
    $region2: #{tpu_custom_call.1} parent=1 // pred_check
      _
    $region3: #{tpu_custom_call.1} parent=1 // pred_check_branch
      %10 = sbr.rel (0) target = $region5
    $region4: #{tpu_custom_call.1} parent=1 // pred_region
      %s12 = ssub.s32 2048, 2048
      %13 = vsyncadd [#allocation3], %s12
      %s14 = sshll.u32 [#allocation2], 4
      %s15 = int_to_ptr.vmem [resolvable:$true] %s14
      %20 = dma.hbm_to_vmem [thread:$0]  %s0, 2048, %s15, [#allocation3], 128, 128, 8
    $region5: #{tpu_custom_call.1} parent=1 // pred_fallthru
      _
    // Predicated region
    $region6: #{tpu_custom_call.1} parent=1 // pred_check
      _
    $region7: #{tpu_custom_call.1} parent=1 // pred_check_branch
      %22 = sbr.rel (0) target = $region9
    $region8: #{tpu_custom_call.1} parent=1 // pred_region
      _
    $region9: #{tpu_custom_call.1} parent=1 // pred_fallthru
      _
    // Predicated region
    $region10: #{tpu_custom_call.1} parent=1 // pred_check
      _
    $region11: #{tpu_custom_call.1} parent=1 // pred_check_branch
      %24 = sbr.rel (0) target = $region13
    $region12: #{tpu_custom_call.1} parent=1 // pred_region
      %25 = dma.done [#allocation3], 2048
    $region13: #{tpu_custom_call.1} parent=1 // pred_fallthru
      _
    %v26 = vld [vmem:[%s1] sm:$0x1]
    %v27 = vld [vmem:[#allocation2] sm:$0xff]
    %v28 = vld [vmem:[#allocation2 + $0x8] sm:$0xff]
    %v29 = vld [vmem:[#allocation2 + $0x10] sm:$0xff]
    %v30 = vld [vmem:[#allocation2 + $0x18] sm:$0xff]
    %v31 = vld [vmem:[#allocation2 + $0x20] sm:$0xff]
    %v32 = vld [vmem:[#allocation2 + $0x28] sm:$0xff]
    %v33 = vld [vmem:[#allocation2 + $0x30] sm:$0xff]
    %v34 = vld [vmem:[#allocation2 + $0x38] sm:$0xff]
    %v36 = vlaneseq
    %v37 = vshrl.u32 %v36, 7
    %v38 = vsub.s32 0, %v37
    %v39 = vrot.slane %v26, %v38
    %v41 = vmul.f32 %v27, %v39
    %v42 = vmul.f32 %v28, %v39
    %v43 = vmul.f32 %v29, %v39
    %v44 = vmul.f32 %v30, %v39
    %v45 = vmul.f32 %v31, %v39
    %v46 = vmul.f32 %v32, %v39
    %v47 = vmul.f32 %v33, %v39
    %v48 = vmul.f32 %v34, %v39
    %vm49 = vcmask 261120
    %v50 = vsel %vm49, %v41, 0.0
    %51 = vadd.xlane.f32.xlu0 %v50
    %v52 = vpop.xlane.xlu0 %51
    %v53 = vsel %vm49, %v42, 0.0
    %54 = vadd.xlane.f32.xlu0 %v53
    %v55 = vpop.xlane.xlu0 %54
    %v56 = vsel %vm49, %v43, 0.0
    %57 = vadd.xlane.f32.xlu0 %v56
    %v58 = vpop.xlane.xlu0 %57
    %v59 = vsel %vm49, %v44, 0.0
    %60 = vadd.xlane.f32.xlu0 %v59
    %v61 = vpop.xlane.xlu0 %60
    %v62 = vsel %vm49, %v45, 0.0
    %63 = vadd.xlane.f32.xlu0 %v62
    %v64 = vpop.xlane.xlu0 %63
    %v65 = vsel %vm49, %v46, 0.0
    %66 = vadd.xlane.f32.xlu0 %v65
    %v67 = vpop.xlane.xlu0 %66
    %v68 = vsel %vm49, %v47, 0.0
    %69 = vadd.xlane.f32.xlu0 %v68
    %v70 = vpop.xlane.xlu0 %69
    %v71 = vsel %vm49, %v48, 0.0
    %72 = vadd.xlane.f32.xlu0 %v71
    %v73 = vpop.xlane.xlu0 %72
    %v74 = vrot.slane %v52, 4
    %v75 = vmax.f32 %v52, %v74
    %v76 = vrot.slane %v75, 2
    %v77 = vmax.f32 %v75, %v76
    %v78 = vrot.slane %v77, 1
    %v79 = vmax.f32 %v77, %v78
    %v80 = vrot.slane %v55, 4
    %v81 = vmax.f32 %v55, %v80
    %v82 = vrot.slane %v81, 2
    %v83 = vmax.f32 %v81, %v82
    %v84 = vrot.slane %v83, 1
    %v85 = vmax.f32 %v83, %v84
    %v86 = vrot.slane %v58, 4
    %v87 = vmax.f32 %v58, %v86
    %v88 = vrot.slane %v87, 2
    %v89 = vmax.f32 %v87, %v88
    %v90 = vrot.slane %v89, 1
    %v91 = vmax.f32 %v89, %v90
    %v92 = vrot.slane %v61, 4
    %v93 = vmax.f32 %v61, %v92
    %v94 = vrot.slane %v93, 2
    %v95 = vmax.f32 %v93, %v94
    %v96 = vrot.slane %v95, 1
    %v97 = vmax.f32 %v95, %v96
    %v98 = vrot.slane %v64, 4
    %v99 = vmax.f32 %v64, %v98
    %v100 = vrot.slane %v99, 2
    %v101 = vmax.f32 %v99, %v100
    %v102 = vrot.slane %v101, 1
    %v103 = vmax.f32 %v101, %v102
    %v104 = vrot.slane %v67, 4
    %v105 = vmax.f32 %v67, %v104
    %v106 = vrot.slane %v105, 2
    %v107 = vmax.f32 %v105, %v106
    %v108 = vrot.slane %v107, 1
    %v109 = vmax.f32 %v107, %v108
    %v110 = vrot.slane %v70, 4
    %v111 = vmax.f32 %v70, %v110
    %v112 = vrot.slane %v111, 2
    %v113 = vmax.f32 %v111, %v112
    %v114 = vrot.slane %v113, 1
    %v115 = vmax.f32 %v113, %v114
    %v116 = vrot.slane %v73, 4
    %v117 = vmax.f32 %v73, %v116
    %v118 = vrot.slane %v117, 2
    %v119 = vmax.f32 %v117, %v118
    %v120 = vrot.slane %v119, 1
    %v121 = vmax.f32 %v119, %v120
    %v122 = vsub.f32 %v52, %v79
    %v123 = vsub.f32 %v55, %v85
    %v124 = vsub.f32 %v58, %v91
    %v125 = vsub.f32 %v61, %v97
    %v126 = vsub.f32 %v64, %v103
    %v127 = vsub.f32 %v67, %v109
    %v128 = vsub.f32 %v70, %v115
    %v129 = vsub.f32 %v73, %v121
    %v130 = vmul.f32 %v122, 1.442695
    %v131 = vpow.pop %v130
    %v132 = vmul.f32 %v123, 1.442695
    %v133 = vpow.pop %v132
    %v134 = vmul.f32 %v124, 1.442695
    %v135 = vpow.pop %v134
    %v136 = vmul.f32 %v125, 1.442695
    %v137 = vpow.pop %v136
    %v138 = vmul.f32 %v126, 1.442695
    %v139 = vpow.pop %v138
    %v140 = vmul.f32 %v127, 1.442695
    %v141 = vpow.pop %v140
    %v142 = vmul.f32 %v128, 1.442695
    %v143 = vpow.pop %v142
    %v144 = vmul.f32 %v129, 1.442695
    %v145 = vpow.pop %v144
    %v146 = vrot.slane %v131, 4
    %v147 = vadd.f32 %v131, %v146
    %v148 = vrot.slane %v147, 2
    %v149 = vadd.f32 %v147, %v148
    %v150 = vrot.slane %v149, 1
    %v151 = vadd.f32 %v149, %v150
    %v152 = vrot.slane %v133, 4
    %v153 = vadd.f32 %v133, %v152
    %v154 = vrot.slane %v153, 2
    %v155 = vadd.f32 %v153, %v154
    %v156 = vrot.slane %v155, 1
    %v157 = vadd.f32 %v155, %v156
    %v158 = vrot.slane %v135, 4
    %v159 = vadd.f32 %v135, %v158
    %v160 = vrot.slane %v159, 2
    %v161 = vadd.f32 %v159, %v160
    %v162 = vrot.slane %v161, 1
    %v163 = vadd.f32 %v161, %v162
    %v164 = vrot.slane %v137, 4
    %v165 = vadd.f32 %v137, %v164
    %v166 = vrot.slane %v165, 2
    %v167 = vadd.f32 %v165, %v166
    %v168 = vrot.slane %v167, 1
    %v169 = vadd.f32 %v167, %v168
    %v170 = vrot.slane %v139, 4
    %v171 = vadd.f32 %v139, %v170
    %v172 = vrot.slane %v171, 2
    %v173 = vadd.f32 %v171, %v172
    %v174 = vrot.slane %v173, 1
    %v175 = vadd.f32 %v173, %v174
    %v176 = vrot.slane %v141, 4
    %v177 = vadd.f32 %v141, %v176
    %v178 = vrot.slane %v177, 2
    %v179 = vadd.f32 %v177, %v178
    %v180 = vrot.slane %v179, 1
    %v181 = vadd.f32 %v179, %v180
    %v182 = vrot.slane %v143, 4
    %v183 = vadd.f32 %v143, %v182
    %v184 = vrot.slane %v183, 2
    %v185 = vadd.f32 %v183, %v184
    %v186 = vrot.slane %v185, 1
    %v187 = vadd.f32 %v185, %v186
    %v188 = vrot.slane %v145, 4
    %v189 = vadd.f32 %v145, %v188
    %v190 = vrot.slane %v189, 2
    %v191 = vadd.f32 %v189, %v190
    %v192 = vrot.slane %v191, 1
    %v193 = vadd.f32 %v191, %v192
    %v194 = vrcp.pop %v151
    %v195 = vmul.f32 %v131, %v194
    %v196 = vrcp.pop %v157
    %v197 = vmul.f32 %v133, %v196
    %v198 = vrcp.pop %v163
    %v199 = vmul.f32 %v135, %v198
    %v200 = vrcp.pop %v169
    %v201 = vmul.f32 %v137, %v200
    %v202 = vrcp.pop %v175
    %v203 = vmul.f32 %v139, %v202
    %v204 = vrcp.pop %v181
    %v205 = vmul.f32 %v141, %v204
    %v206 = vrcp.pop %v187
    %v207 = vmul.f32 %v143, %v206
    %v208 = vrcp.pop %v193
    %v209 = vmul.f32 %v145, %v208
    %v210 = vmul.f32 %v195, %v27
    %v211 = vmul.f32 %v197, %v28
    %v212 = vmul.f32 %v199, %v29
    %v213 = vmul.f32 %v201, %v30
    %v214 = vmul.f32 %v203, %v31
    %v215 = vmul.f32 %v205, %v32
    %v216 = vmul.f32 %v207, %v33
    %v217 = vmul.f32 %v209, %v34
    %v218 = vsel %vm49, %v210, 0.0
    %v219 = vrot.slane %v218, 4
    %v220 = vadd.f32 %v218, %v219
    %v221 = vrot.slane %v220, 2
    %v222 = vadd.f32 %v220, %v221
    %v223 = vrot.slane %v222, 1
    %v224 = vadd.f32 %v222, %v223
    %v225 = vsel %vm49, %v211, 0.0
    %v226 = vrot.slane %v225, 4
    %v227 = vadd.f32 %v225, %v226
    %v228 = vrot.slane %v227, 2
    %v229 = vadd.f32 %v227, %v228
    %v230 = vrot.slane %v229, 1
    %v231 = vadd.f32 %v229, %v230
    %v232 = vsel %vm49, %v212, 0.0
    %v233 = vrot.slane %v232, 4
    %v234 = vadd.f32 %v232, %v233
    %v235 = vrot.slane %v234, 2
    %v236 = vadd.f32 %v234, %v235
    %v237 = vrot.slane %v236, 1
    %v238 = vadd.f32 %v236, %v237
    %v239 = vsel %vm49, %v213, 0.0
    %v240 = vrot.slane %v239, 4
    %v241 = vadd.f32 %v239, %v240
    %v242 = vrot.slane %v241, 2
    %v243 = vadd.f32 %v241, %v242
    %v244 = vrot.slane %v243, 1
    %v245 = vadd.f32 %v243, %v244
    %v246 = vsel %vm49, %v214, 0.0
    %v247 = vrot.slane %v246, 4
    %v248 = vadd.f32 %v246, %v247
    %v249 = vrot.slane %v248, 2
    %v250 = vadd.f32 %v248, %v249
    %v251 = vrot.slane %v250, 1
    %v252 = vadd.f32 %v250, %v251
    %v253 = vsel %vm49, %v215, 0.0
    %v254 = vrot.slane %v253, 4
    %v255 = vadd.f32 %v253, %v254
    %v256 = vrot.slane %v255, 2
    %v257 = vadd.f32 %v255, %v256
    %v258 = vrot.slane %v257, 1
    %v259 = vadd.f32 %v257, %v258
    %v260 = vsel %vm49, %v216, 0.0
    %v261 = vrot.slane %v260, 4
    %v262 = vadd.f32 %v260, %v261
    %v263 = vrot.slane %v262, 2
    %v264 = vadd.f32 %v262, %v263
    %v265 = vrot.slane %v264, 1
    %v266 = vadd.f32 %v264, %v265
    %v267 = vsel %vm49, %v217, 0.0
    %v268 = vrot.slane %v267, 4
    %v269 = vadd.f32 %v267, %v268
    %v270 = vrot.slane %v269, 2
    %v271 = vadd.f32 %v269, %v270
    %v272 = vrot.slane %v271, 1
    %v273 = vadd.f32 %v271, %v272
    %vm282 = vcmask 1041409
    %v283 = vsel %vm282, %v231, %v224
    %vm284 = vcmask 1042434
    %v285 = vsel %vm284, %v238, %v283
    %vm286 = vcmask 1043459
    %v287 = vsel %vm286, %v245, %v285
    %vm288 = vcmask 1044484
    %v289 = vsel %vm288, %v252, %v287
    %vm290 = vcmask 1045509
    %v291 = vsel %vm290, %v259, %v289
    %vm292 = vcmask 1046534
    %v293 = vsel %vm292, %v266, %v291
    %vm294 = vcmask 1047559
    %v295 = vsel %vm294, %v273, %v293
    %297 = vst.msk [vmem:[#allocation5] sm:$0xff] %vm49, %v295
    %s298 = scalar_lea.vmem [#allocation2], 64
    %v299 = vld [vmem:[%s298] sm:$0xff]
    %v300 = vld [vmem:[%s298 + $0x8] sm:$0xff]
    %v301 = vld [vmem:[%s298 + $0x10] sm:$0xff]
    %v302 = vld [vmem:[%s298 + $0x18] sm:$0xff]
    %v303 = vld [vmem:[%s298 + $0x20] sm:$0xff]
    %v304 = vld [vmem:[%s298 + $0x28] sm:$0xff]
    %v305 = vld [vmem:[%s298 + $0x30] sm:$0xff]
    %v306 = vld [vmem:[%s298 + $0x38] sm:$0xff]
    %v307 = vmul.f32 %v299, %v39
    %v308 = vmul.f32 %v300, %v39
    %v309 = vmul.f32 %v301, %v39
    %v310 = vmul.f32 %v302, %v39
    %v311 = vmul.f32 %v303, %v39
    %v312 = vmul.f32 %v304, %v39
    %v313 = vmul.f32 %v305, %v39
    %v314 = vmul.f32 %v306, %v39
    %v315 = vsel %vm49, %v307, 0.0
    %316 = vadd.xlane.f32.xlu0 %v315
    %v317 = vpop.xlane.xlu0 %316
    %v318 = vsel %vm49, %v308, 0.0
    %319 = vadd.xlane.f32.xlu0 %v318
    %v320 = vpop.xlane.xlu0 %319
    %v321 = vsel %vm49, %v309, 0.0
    %322 = vadd.xlane.f32.xlu0 %v321
    %v323 = vpop.xlane.xlu0 %322
    %v324 = vsel %vm49, %v310, 0.0
    %325 = vadd.xlane.f32.xlu0 %v324
    %v326 = vpop.xlane.xlu0 %325
    %v327 = vsel %vm49, %v311, 0.0
    %328 = vadd.xlane.f32.xlu0 %v327
    %v329 = vpop.xlane.xlu0 %328
    %v330 = vsel %vm49, %v312, 0.0
    %331 = vadd.xlane.f32.xlu0 %v330
    %v332 = vpop.xlane.xlu0 %331
    %v333 = vsel %vm49, %v313, 0.0
    %334 = vadd.xlane.f32.xlu0 %v333
    %v335 = vpop.xlane.xlu0 %334
    %v336 = vsel %vm49, %v314, 0.0
    %337 = vadd.xlane.f32.xlu0 %v336
    %v338 = vpop.xlane.xlu0 %337
    %v339 = vrot.slane %v317, 4
    %v340 = vmax.f32 %v317, %v339
    %v341 = vrot.slane %v340, 2
    %v342 = vmax.f32 %v340, %v341
    %v343 = vrot.slane %v342, 1
    %v344 = vmax.f32 %v342, %v343
    %v345 = vrot.slane %v320, 4
    %v346 = vmax.f32 %v320, %v345
    %v347 = vrot.slane %v346, 2
    %v348 = vmax.f32 %v346, %v347
    %v349 = vrot.slane %v348, 1
    %v350 = vmax.f32 %v348, %v349
    %v351 = vrot.slane %v323, 4
    %v352 = vmax.f32 %v323, %v351
    %v353 = vrot.slane %v352, 2
    %v354 = vmax.f32 %v352, %v353
    %v355 = vrot.slane %v354, 1
    %v356 = vmax.f32 %v354, %v355
    %v357 = vrot.slane %v326, 4
    %v358 = vmax.f32 %v326, %v357
    %v359 = vrot.slane %v358, 2
    %v360 = vmax.f32 %v358, %v359
    %v361 = vrot.slane %v360, 1
    %v362 = vmax.f32 %v360, %v361
    %v363 = vrot.slane %v329, 4
    %v364 = vmax.f32 %v329, %v363
    %v365 = vrot.slane %v364, 2
    %v366 = vmax.f32 %v364, %v365
    %v367 = vrot.slane %v366, 1
    %v368 = vmax.f32 %v366, %v367
    %v369 = vrot.slane %v332, 4
    %v370 = vmax.f32 %v332, %v369
    %v371 = vrot.slane %v370, 2
    %v372 = vmax.f32 %v370, %v371
    %v373 = vrot.slane %v372, 1
    %v374 = vmax.f32 %v372, %v373
    %v375 = vrot.slane %v335, 4
    %v376 = vmax.f32 %v335, %v375
    %v377 = vrot.slane %v376, 2
    %v378 = vmax.f32 %v376, %v377
    %v379 = vrot.slane %v378, 1
    %v380 = vmax.f32 %v378, %v379
    %v381 = vrot.slane %v338, 4
    %v382 = vmax.f32 %v338, %v381
    %v383 = vrot.slane %v382, 2
    %v384 = vmax.f32 %v382, %v383
    %v385 = vrot.slane %v384, 1
    %v386 = vmax.f32 %v384, %v385
    %v387 = vsub.f32 %v317, %v344
    %v388 = vsub.f32 %v320, %v350
    %v389 = vsub.f32 %v323, %v356
    %v390 = vsub.f32 %v326, %v362
    %v391 = vsub.f32 %v329, %v368
    %v392 = vsub.f32 %v332, %v374
    %v393 = vsub.f32 %v335, %v380
    %v394 = vsub.f32 %v338, %v386
    %v395 = vmul.f32 %v387, 1.442695
    %v396 = vpow.pop %v395
    %v397 = vmul.f32 %v388, 1.442695
    %v398 = vpow.pop %v397
    %v399 = vmul.f32 %v389, 1.442695
    %v400 = vpow.pop %v399
    %v401 = vmul.f32 %v390, 1.442695
    %v402 = vpow.pop %v401
    %v403 = vmul.f32 %v391, 1.442695
    %v404 = vpow.pop %v403
    %v405 = vmul.f32 %v392, 1.442695
    %v406 = vpow.pop %v405
    %v407 = vmul.f32 %v393, 1.442695
    %v408 = vpow.pop %v407
    %v409 = vmul.f32 %v394, 1.442695
    %v410 = vpow.pop %v409
    %v411 = vrot.slane %v396, 4
    %v412 = vadd.f32 %v396, %v411
    %v413 = vrot.slane %v412, 2
    %v414 = vadd.f32 %v412, %v413
    %v415 = vrot.slane %v414, 1
    %v416 = vadd.f32 %v414, %v415
    %v417 = vrot.slane %v398, 4
    %v418 = vadd.f32 %v398, %v417
    %v419 = vrot.slane %v418, 2
    %v420 = vadd.f32 %v418, %v419
    %v421 = vrot.slane %v420, 1
    %v422 = vadd.f32 %v420, %v421
    %v423 = vrot.slane %v400, 4
    %v424 = vadd.f32 %v400, %v423
    %v425 = vrot.slane %v424, 2
    %v426 = vadd.f32 %v424, %v425
    %v427 = vrot.slane %v426, 1
    %v428 = vadd.f32 %v426, %v427
    %v429 = vrot.slane %v402, 4
    %v430 = vadd.f32 %v402, %v429
    %v431 = vrot.slane %v430, 2
    %v432 = vadd.f32 %v430, %v431
    %v433 = vrot.slane %v432, 1
    %v434 = vadd.f32 %v432, %v433
    %v435 = vrot.slane %v404, 4
    %v436 = vadd.f32 %v404, %v435
    %v437 = vrot.slane %v436, 2
    %v438 = vadd.f32 %v436, %v437
    %v439 = vrot.slane %v438, 1
    %v440 = vadd.f32 %v438, %v439
    %v441 = vrot.slane %v406, 4
    %v442 = vadd.f32 %v406, %v441
    %v443 = vrot.slane %v442, 2
    %v444 = vadd.f32 %v442, %v443
    %v445 = vrot.slane %v444, 1
    %v446 = vadd.f32 %v444, %v445
    %v447 = vrot.slane %v408, 4
    %v448 = vadd.f32 %v408, %v447
    %v449 = vrot.slane %v448, 2
    %v450 = vadd.f32 %v448, %v449
    %v451 = vrot.slane %v450, 1
    %v452 = vadd.f32 %v450, %v451
    %v453 = vrot.slane %v410, 4
    %v454 = vadd.f32 %v410, %v453
    %v455 = vrot.slane %v454, 2
    %v456 = vadd.f32 %v454, %v455
    %v457 = vrot.slane %v456, 1
    %v458 = vadd.f32 %v456, %v457
    %v459 = vrcp.pop %v416
    %v460 = vmul.f32 %v396, %v459
    %v461 = vrcp.pop %v422
    %v462 = vmul.f32 %v398, %v461
    %v463 = vrcp.pop %v428
    %v464 = vmul.f32 %v400, %v463
    %v465 = vrcp.pop %v434
    %v466 = vmul.f32 %v402, %v465
    %v467 = vrcp.pop %v440
    %v468 = vmul.f32 %v404, %v467
    %v469 = vrcp.pop %v446
    %v470 = vmul.f32 %v406, %v469
    %v471 = vrcp.pop %v452
    %v472 = vmul.f32 %v408, %v471
    %v473 = vrcp.pop %v458
    %v474 = vmul.f32 %v410, %v473
    %v475 = vmul.f32 %v460, %v299
    %v476 = vmul.f32 %v462, %v300
    %v477 = vmul.f32 %v464, %v301
    %v478 = vmul.f32 %v466, %v302
    %v479 = vmul.f32 %v468, %v303
    %v480 = vmul.f32 %v470, %v304
    %v481 = vmul.f32 %v472, %v305
    %v482 = vmul.f32 %v474, %v306
    %v483 = vsel %vm49, %v475, 0.0
    %v484 = vrot.slane %v483, 4
    %v485 = vadd.f32 %v483, %v484
    %v486 = vrot.slane %v485, 2
    %v487 = vadd.f32 %v485, %v486
    %v488 = vrot.slane %v487, 1
    %v489 = vadd.f32 %v487, %v488
    %v490 = vsel %vm49, %v476, 0.0
    %v491 = vrot.slane %v490, 4
    %v492 = vadd.f32 %v490, %v491
    %v493 = vrot.slane %v492, 2
    %v494 = vadd.f32 %v492, %v493
    %v495 = vrot.slane %v494, 1
    %v496 = vadd.f32 %v494, %v495
    %v497 = vsel %vm49, %v477, 0.0
    %v498 = vrot.slane %v497, 4
    %v499 = vadd.f32 %v497, %v498
    %v500 = vrot.slane %v499, 2
    %v501 = vadd.f32 %v499, %v500
    %v502 = vrot.slane %v501, 1
    %v503 = vadd.f32 %v501, %v502
    %v504 = vsel %vm49, %v478, 0.0
    %v505 = vrot.slane %v504, 4
    %v506 = vadd.f32 %v504, %v505
    %v507 = vrot.slane %v506, 2
    %v508 = vadd.f32 %v506, %v507
    %v509 = vrot.slane %v508, 1
    %v510 = vadd.f32 %v508, %v509
    %v511 = vsel %vm49, %v479, 0.0
    %v512 = vrot.slane %v511, 4
    %v513 = vadd.f32 %v511, %v512
    %v514 = vrot.slane %v513, 2
    %v515 = vadd.f32 %v513, %v514
    %v516 = vrot.slane %v515, 1
    %v517 = vadd.f32 %v515, %v516
    %v518 = vsel %vm49, %v480, 0.0
    %v519 = vrot.slane %v518, 4
    %v520 = vadd.f32 %v518, %v519
    %v521 = vrot.slane %v520, 2
    %v522 = vadd.f32 %v520, %v521
    %v523 = vrot.slane %v522, 1
    %v524 = vadd.f32 %v522, %v523
    %v525 = vsel %vm49, %v481, 0.0
    %v526 = vrot.slane %v525, 4
    %v527 = vadd.f32 %v525, %v526
    %v528 = vrot.slane %v527, 2
    %v529 = vadd.f32 %v527, %v528
    %v530 = vrot.slane %v529, 1
    %v531 = vadd.f32 %v529, %v530
    %v532 = vsel %vm49, %v482, 0.0
    %v533 = vrot.slane %v532, 4
    %v534 = vadd.f32 %v532, %v533
    %v535 = vrot.slane %v534, 2
    %v536 = vadd.f32 %v534, %v535
    %v537 = vrot.slane %v536, 1
    %v538 = vadd.f32 %v536, %v537
    %v547 = vsel %vm282, %v496, %v489
    %v548 = vsel %vm284, %v503, %v547
    %v549 = vsel %vm286, %v510, %v548
    %v550 = vsel %vm288, %v517, %v549
    %v551 = vsel %vm290, %v524, %v550
    %v552 = vsel %vm292, %v531, %v551
    %v553 = vsel %vm294, %v538, %v552
    %555 = vst.msk [vmem:[#allocation5 + $0x8] sm:$0xff] %vm49, %v553
    // Predicated region
    $region14: #{tpu_custom_call.1} parent=1 // pred_check
      _
    $region15: #{tpu_custom_call.1} parent=1 // pred_check_branch
      %557 = sbr.rel (0) target = $region17
    $region16: #{tpu_custom_call.1} parent=1 // pred_region
      %s559 = ssub.s32 256, 256
      %560 = vsyncadd [#allocation4], %s559
      %s561 = sshll.u32 [#allocation5], 4
      %s562 = int_to_ptr.vmem [resolvable:$true] %s561
      %567 = dma.vmem_to_hbm [thread:$0]  %s562, 256, %s2, [#allocation4], 128, 128, 8
    $region17: #{tpu_custom_call.1} parent=1 // pred_fallthru
      _
    // Predicated region
    $region18: #{tpu_custom_call.1} parent=1 // pred_check
      _
    $region19: #{tpu_custom_call.1} parent=1 // pred_check_branch
      %569 = sbr.rel (0) target = $region21
    $region20: #{tpu_custom_call.1} parent=1 // pred_region
      %570 = dma.done [#allocation4], 256
    $region21: #{tpu_custom_call.1} parent=1 // pred_fallthru
      _
    %571 = vsyncpa [#allocation3], 1
    %572 = vsyncpa [#allocation4], 1

</llo_original>
